<compile_context>
chip_gen: v7x
topology: tpu7x:2x2x1
jax: 0.10.0
libtpu: 0.0.40
codegen_flags: <defaults>
</compile_context>

<pallas_src>
import math
import jax
import jax.numpy as jnp
from jax import lax
from jax.experimental import pallas as pl
from jax.experimental.pallas import tpu as pltpu


# ---------------------------------------------------------------------------
# Pallas kernels
# ---------------------------------------------------------------------------
def linear_kernel(x_ref, w_ref, b_ref, o_ref, acc_ref):
    """One (tm, tn) output tile; reduction over the K grid axis (axis 2)."""

    @pl.when(pl.program_id(2) == 0)
    def _():
        acc_ref[...] = jnp.zeros_like(acc_ref)

    # bf16 MXU operands, f32 accumulation.  Weights arrive pre-cast to bf16
    # (the astype is a no-op then); activations are cast per tile.
    acc_ref[...] += jnp.dot(
        x_ref[...].astype(jnp.bfloat16),
        w_ref[...].astype(jnp.bfloat16),
        preferred_element_type=jnp.float32,
    )

    @pl.when(pl.program_id(2) == pl.num_programs(2) - 1)
    def _():
        o_ref[...] = (acc_ref[...] + b_ref[...]).astype(o_ref.dtype)


def attention_kernel(qkv_ref, values_ref, attn_ref):
    """One (batch, head, query-tile) step of scaled-dot-product attention.

    qkv_ref    : [S, 3, hd]  f32  (this head's q/k/v stacked on a non-lane axis)
    values_ref : [tq, hd]
    attn_ref   : [tq, S]
    """
    tq, hd = values_ref.shape
    qi = pl.program_id(2)
    q_start = pl.multiple_of(qi * tq, tq)

    # TODO(synk): optional additive `mask` argument not wired in (forward is
    # exercised with mask=None, matching the default call path).

    scale = 1.0 / math.sqrt(hd)
    # Fold 1/sqrt(hd) into q (tq*hd elements) instead of the [tq, S] scores.
    q = (qkv_ref[pl.ds(q_start, tq), 0, :] * scale).astype(jnp.bfloat16)  # [tq, hd]
    k = qkv_ref[:, 1, :].astype(jnp.bfloat16)                             # [S,  hd]
    v = qkv_ref[:, 2, :].astype(jnp.bfloat16)                             # [S,  hd]

    # q @ k^T contracting the last axis of both — no explicit k transpose.
    scores = lax.dot_general(
        q, k, (((1,), (1,)), ((), ())), preferred_element_type=jnp.float32
    )                                                                     # [tq, S]

    # Softmax in f32.  The exported attention map is normalised EXACTLY
    # (review correctness concern: rows must sum to 1 up to f32 rounding).
    scores = scores - jnp.max(scores, axis=-1, keepdims=True)
    p = jnp.exp(scores)
    p = p / jnp.sum(p, axis=-1, keepdims=True)

    attn_ref[...] = p.astype(attn_ref.dtype)
    # NOTE: for hd < 128 this values store is a masked partial store; for
    # production model sizes pick hd as a multiple of 128 (or relayout to a
    # lane-dense slab before the store).
    values_ref[...] = jnp.dot(
        p.astype(jnp.bfloat16), v, preferred_element_type=jnp.float32
    ).astype(values_ref.dtype)


# ---------------------------------------------------------------------------
# Wrappers around pallas_call
# ---------------------------------------------------------------------------
def _fit_tile(dim, preferred, align):
    """Largest `align`-aligned divisor of `dim` that is <= preferred.

    If dim <= preferred the full extent is used (always legal).  Only if no
    aligned divisor exists do we fall back to the full extent.
    """
    if dim <= preferred:
        return dim
    for cand in range(min(preferred, dim), 0, -1):
        if dim % cand == 0 and cand % align == 0:
            return cand
    return dim


def pallas_linear(x2d, w, b, *, tm=256, tn=256, tk=512):
    """x2d: [M, K] f32, w: [K, N] (bf16 preferred), b: [N] f32 -> [M, N] f32."""
    M, K = x2d.shape
    N = w.shape[1]
    tm = _fit_tile(M, tm, 8)     # sublane-aligned
    tn = _fit_tile(N, tn, 128)   # lane-aligned
    tk = _fit_tile(K, tk, 128)   # lane (x) and sublane (w) aligned
    b2d = b.reshape(1, N)

    return pl.pallas_call(
        linear_kernel,
        out_shape=jax.ShapeDtypeStruct((M, N), x2d.dtype),
        grid_spec=pltpu.PrefetchScalarGridSpec(
            num_scalar_prefetch=0,
            grid=(M // tm, N // tn, K // tk),
            in_specs=[
                pl.BlockSpec((tm, tk), lambda i, j, k: (i, k)),
                pl.BlockSpec((tk, tn), lambda i, j, k: (k, j)),
                pl.BlockSpec((1, tn), lambda i, j, k: (0, j)),
            ],
            out_specs=pl.BlockSpec((tm, tn), lambda i, j, k: (i, j)),
            scratch_shapes=[pltpu.VMEM((tm, tn), jnp.float32)],
        ),
        compiler_params=pltpu.CompilerParams(
            dimension_semantics=("parallel", "parallel", "arbitrary"),
            # ~3 MiB per-step footprint; 32 MiB is safe on every generation
            # (raise towards 64-100 MiB on v6e and grow tiles if desired).
            vmem_limit_bytes=32 * 1024 * 1024,
        ),
    )(x2d, w, b2d)


def pallas_attention(qkv5, *, attn_dtype=jnp.bfloat16, tq_preferred=256):
    """qkv5: [B, S, H, 3, hd] -> (values [B,H,S,hd] f32, attention [B,H,S,S]).

    Grid = (B, H, S//tq).  The head (and batch) are selected purely by the
    BlockSpec index_map — no in-kernel transpose and no other heads resident.
    The qkv tile's block index is constant across the q-tile axis, so Pallas
    keeps it resident (no re-fetch) while the query tiles stream out.
    """
    B, S, H, three, hd = qkv5.shape
    assert three == 3
    tq = _fit_tile(S, tq_preferred, 8)
    nq = S // tq

    values, attn = pl.pallas_call(
        attention_kernel,
        out_shape=(
            jax.ShapeDtypeStruct((B, H, S, hd), jnp.float32),
            jax.ShapeDtypeStruct((B, H, S, S), attn_dtype),
        ),
        grid=(B, H, nq),
        in_specs=[
            # [S, 3, hd] per (batch, head); last two block dims are full-extent.
            pl.BlockSpec((None, S, None, 3, hd), lambda b, h, qi: (b, 0, h, 0, 0)),
        ],
        out_specs=(
            pl.BlockSpec((None, None, tq, hd), lambda b, h, qi: (b, h, qi, 0)),
            pl.BlockSpec((None, None, tq, S), lambda b, h, qi: (b, h, qi, 0)),
        ),
        compiler_params=pltpu.CompilerParams(
            dimension_semantics=("parallel", "parallel", "arbitrary"),
            vmem_limit_bytes=32 * 1024 * 1024,
        ),
    )(qkv5)
    return values, attn


def prepare_params(params_f32):
    """Pre-cast static weights to bf16 outside the kernels (halves the HBM
    weight stream and the w-tile VMEM); biases stay f32."""
    return {
        "w_qkv": params_f32["w_qkv"].astype(jnp.bfloat16),
        "b_qkv": params_f32["b_qkv"],
        "w_out": params_f32["w_out"].astype(jnp.bfloat16),
        "b_out": params_f32["b_out"],
    }


def multihead_attention_forward(x, params, num_heads, *, attn_dtype=jnp.bfloat16):
    """Reproduces Multihead_Attention.forward (mask=None)."""
    B, S, D = x.shape
    hd = D // num_heads

    # qkv = self.qkv_layer(x)
    qkv = pallas_linear(x.reshape(B * S, D), params["w_qkv"], params["b_qkv"])

    # Pure reshape only (exact PyTorch column order): [B, S, H, 3, hd].
    # Head selection + q/k/v split happen via BlockSpec / a non-lane-axis
    # index inside the attention kernel.
    qkv5 = qkv.reshape(B, S, num_heads, 3, hd)

    values, attention = pallas_attention(qkv5, attn_dtype=attn_dtype)

    # values.reshape(B, S, H*hd)  (NO transpose back — exact PyTorch semantics)
    values_flat = values.reshape(B, S, num_heads * hd)

    # out = self.qkv_linear(values)
    out = pallas_linear(
        values_flat.reshape(B * S, D), params["w_out"], params["b_out"]
    ).reshape(B, S, D)
    return out, attention


# ---------------------------------------------------------------------------
# Deterministic parameter init (torch.nn.Linear style: U(-1/sqrt(fan_in), +))
# ---------------------------------------------------------------------------
def init_params(key, d_model):
    k1, k2, k3, k4 = jax.random.split(key, 4)
    bound = 1.0 / math.sqrt(d_model)
    # weights stored as [in, out] (transpose of torch's [out, in])
    w_qkv = jax.random.uniform(k1, (d_model, 3 * d_model), jnp.float32, -bound, bound)
    b_qkv = jax.random.uniform(k2, (3 * d_model,), jnp.float32, -bound, bound)
    w_out = jax.random.uniform(k3, (d_model, d_model), jnp.float32, -bound, bound)
    b_out = jax.random.uniform(k4, (d_model,), jnp.float32, -bound, bound)
    return {"w_qkv": w_qkv, "b_qkv": b_qkv, "w_out": w_out, "b_out": b_out}


# ---------------------------------------------------------------------------
# Pure-JAX (f32) reference for a correctness sanity check
# ---------------------------------------------------------------------------
def reference_forward(x, params, num_heads):
    B, S, D = x.shape
    hd = D // num_heads
    qkv = x.reshape(B * S, D) @ params["w_qkv"] + params["b_qkv"]
    qkv = qkv.reshape(B, S, num_heads, 3 * hd).transpose(0, 2, 1, 3)
    q, k, v = qkv[..., :hd], qkv[..., hd:2 * hd], qkv[..., 2 * hd:]
    scores = jnp.einsum("bhqd,bhkd->bhqk", q, k) / math.sqrt(hd)
    attn = jax.nn.softmax(scores, axis=-1)
    values = jnp.einsum("bhqk,bhkd->bhqd", attn, v)
    values_flat = values.reshape(B, S, D)
    out = values_flat.reshape(B * S, D) @ params["w_out"] + params["b_out"]
    return out.reshape(B, S, D), attn


# ---------------------------------------------------------------------------
if __name__ == "__main__":
    B, S, D, H = 2, 8, 32, 4   # batch, seq, d_model, num_heads (head_dim = 8)

    key = jax.random.PRNGKey(0)
    kx, kp = jax.random.split(key)
    x = jax.random.normal(kx, (B, S, D), dtype=jnp.float32)
    params_f32 = init_params(kp, D)
    params = prepare_params(params_f32)   # bf16 weights, f32 biases

    out, attn = multihead_attention_forward(x, params, H)
    out = jax.block_until_ready(out)
    attn = jax.block_until_ready(attn)

    out_ref, attn_ref = reference_forward(x, params_f32, H)
    assert out.shape == (B, S, D) and attn.shape == (B, H, S, S)
    # bf16 MXU operands / bf16 attention-map storage (f32 accumulate, f32
    # softmax) -> ~1e-2-level drift vs the pure-f32 reference; intentional.
    attn_f32 = attn.astype(jnp.float32)
    assert jnp.allclose(attn_f32, attn_ref, rtol=2e-2, atol=2e-2), (
        float(jnp.max(jnp.abs(attn_f32 - attn_ref)))
    )
    assert jnp.allclose(out, out_ref, rtol=5e-2, atol=5e-2), (
        float(jnp.max(jnp.abs(out - out_ref)))
    )

    print("KERNEL_OK")
</pallas_src>

<mosaic_0001>
module attributes {stable_mosaic.version = 11 : i64} {
  func.func @linear_kernel(%arg0: i32, %arg1: i32, %arg2: i32, %arg3: memref<16x32xf32, #tpu.memory_space<vmem>>, %arg4: memref<32x96xbf16, #tpu.memory_space<vmem>>, %arg5: memref<1x96xf32, #tpu.memory_space<vmem>>, %arg6: memref<16x96xf32, #tpu.memory_space<vmem>>, %arg7: memref<16x96xf32, #tpu.memory_space<vmem>>) attributes {dimension_semantics = [#tpu.dimension_semantics<parallel>, #tpu.dimension_semantics<parallel>, #tpu.dimension_semantics<arbitrary>], iteration_bounds = array<i64: 1, 1, 1>, scalar_prefetch = 0 : i64, scratch_operands = 1 : i64, tpu.core_type = #tpu.core_type<tc>, window_params = [{transform_indices = @transform_0, window_bounds = array<i64: 16, 32>}, {transform_indices = @transform_1, window_bounds = array<i64: 32, 96>}, {transform_indices = @transform_2, window_bounds = array<i64: 1, 96>}, {transform_indices = @transform_3, window_bounds = array<i64: 16, 96>}]} {
    %c0_i32 = arith.constant 0 : i32
    %0 = arith.cmpi eq, %arg2, %c0_i32 : i32
    %1 = arith.extui %0 : i1 to i32
    %c0_i32_0 = arith.constant 0 : i32
    %2 = arith.cmpi ne, %1, %c0_i32_0 : i32
    scf.if %2 {
      %cst_10 = arith.constant 0.000000e+00 : f32
      %13 = vector.broadcast %cst_10 : f32 to vector<16x96xf32>
      %c0_11 = arith.constant 0 : index
      %c0_12 = arith.constant 0 : index
      %14 = vector.load %arg7[%c0_11, %c0_12] : memref<16x96xf32, #tpu.memory_space<vmem>>, vector<16x96xf32>
      tpu.vector_store %arg7[%c0_11, %c0_12], %13 {strides = array<i32>} : memref<16x96xf32, #tpu.memory_space<vmem>>, vector<16x96xf32>,
    } else {
    }
    %c0 = arith.constant 0 : index
    %c0_1 = arith.constant 0 : index
    %3 = vector.load %arg7[%c0, %c0_1] : memref<16x96xf32, #tpu.memory_space<vmem>>, vector<16x96xf32>
    %c0_2 = arith.constant 0 : index
    %c0_3 = arith.constant 0 : index
    %4 = vector.load %arg3[%c0_2, %c0_3] : memref<16x32xf32, #tpu.memory_space<vmem>>, vector<16x32xf32>
    %5 = arith.truncf %4 : vector<16x32xf32> to vector<16x32xbf16>
    %c0_4 = arith.constant 0 : index
    %c0_5 = arith.constant 0 : index
    %6 = vector.load %arg4[%c0_4, %c0_5] : memref<32x96xbf16, #tpu.memory_space<vmem>>, vector<32x96xbf16>
    %cst = arith.constant dense<0.000000e+00> : vector<16x96xf32>
    %7 = tpu.matmul %5, %6, %cst {dimension_numbers = #tpu.dot_dimension_numbers<[1], [0], [0], [1], [0, 0, 1, 1], [], []>} : vector<16x32xbf16>, vector<32x96xbf16>, vector<16x96xf32> -> vector<16x96xf32>
    %8 = arith.addf %3, %7 : vector<16x96xf32>
    %c0_6 = arith.constant 0 : index
    %c0_7 = arith.constant 0 : index
    %9 = vector.load %arg7[%c0_6, %c0_7] : memref<16x96xf32, #tpu.memory_space<vmem>>, vector<16x96xf32>
    tpu.vector_store %arg7[%c0_6, %c0_7], %8 {strides = array<i32>} : memref<16x96xf32, #tpu.memory_space<vmem>>, vector<16x96xf32>,
    %c0_i32_8 = arith.constant 0 : i32
    %10 = arith.cmpi eq, %arg2, %c0_i32_8 : i32
    %11 = arith.extui %10 : i1 to i32
    %c0_i32_9 = arith.constant 0 : i32
    %12 = arith.cmpi ne, %11, %c0_i32_9 : i32
    scf.if %12 {
      %c0_10 = arith.constant 0 : index
      %c0_11 = arith.constant 0 : index
      %13 = vector.load %arg7[%c0_10, %c0_11] : memref<16x96xf32, #tpu.memory_space<vmem>>, vector<16x96xf32>
      %c0_12 = arith.constant 0 : index
      %c0_13 = arith.constant 0 : index
      %14 = vector.load %arg5[%c0_12, %c0_13] : memref<1x96xf32, #tpu.memory_space<vmem>>, vector<1x96xf32>
      %15 = vector.broadcast %14 : vector<1x96xf32> to vector<16x96xf32>
      %16 = arith.addf %13, %15 : vector<16x96xf32>
      %c0_14 = arith.constant 0 : index
      %c0_15 = arith.constant 0 : index
      %17 = vector.load %arg6[%c0_14, %c0_15] : memref<16x96xf32, #tpu.memory_space<vmem>>, vector<16x96xf32>
      tpu.vector_store %arg6[%c0_14, %c0_15], %16 {strides = array<i32>} : memref<16x96xf32, #tpu.memory_space<vmem>>, vector<16x96xf32>,
    } else {
    }
    return
  }
  func.func @transform_0(%arg0: i32, %arg1: i32, %arg2: i32) -> (i32, i32) {
    %c0_i32 = arith.constant 0 : i32
    return %arg0, %arg2 : i32, i32
  }
  func.func @transform_1(%arg0: i32, %arg1: i32, %arg2: i32) -> (i32, i32) {
    %c0_i32 = arith.constant 0 : i32
    return %arg2, %arg1 : i32, i32
  }
  func.func @transform_2(%arg0: i32, %arg1: i32, %arg2: i32) -> (i32, i32) {
    %c0_i32 = arith.constant 0 : i32
    %c0_i32_0 = arith.constant 0 : i32
    return %c0_i32, %arg1 : i32, i32
  }
  func.func @transform_3(%arg0: i32, %arg1: i32, %arg2: i32) -> (i32, i32) {
    %c0_i32 = arith.constant 0 : i32
    return %arg0, %arg1 : i32, i32
  }
}

</mosaic_0001>

<llo_original>
// kernel: tpu_custom_call.1
$region0: #{tpu_custom_call.1}
  #allocation0 [shape = 'u32[]', space=smem, size = 0x4, offset = 0x4, fixed_abs, tag = 'smem constant byte address 0x4 - core index']
  #allocation1 [shape = 'u32[144,128]{1,0:T(1,128)}', space=vmem, size = 0x12000, scoped, tag = 'internal scratch']
  #allocation2 [shape = 'f32[16,96]{1,0:T(8,128)}', space=vmem, size = 0x2000, scoped, tag = 'scratch operand']
  %s0 = inlined_call_operand.hbm [shape: f32[16,32], index: 0, kind: input, shape index: {}]
  %s1 = inlined_call_operand.hbm [shape: bf16[32,96], index: 1, kind: input, shape index: {}]
  %s2 = inlined_call_operand.vmem [shape: f32[1,96], index: 2, kind: input, shape index: {}]
  %s3 = inlined_call_operand.hbm [shape: f32[16,96], index: 3, kind: output, shape index: {}]
  %s4 = sld [smem:[#allocation0]]
  $region38: #{tpu_custom_call.1} parent=0
    _
  %s6 = ssub.s32 1, %s4
  %s7 = scalar_select 0, %s6, %s4
  $region1: #{tpu_custom_call.1} parent=0
    #allocation3 [shape = 'u8[8192]{0}', space=vmem, size = 0x2000, scoped, tag = 'input window, operand 0, single buffered']
    #allocation4 [shape = 's32[1]{0}', space=sflag, size = 0x4, scoped, tag = 'scoped memory for tpu_custom_call.1']
    #allocation5 [shape = 's32[1]{0}', space=sflag, size = 0x4, scoped, tag = 'scoped memory for tpu_custom_call.1']
    #allocation6 [shape = 'u8[8192]{0}', space=vmem, size = 0x2000, scoped, tag = 'input window, operand 1, single buffered']
    #allocation7 [shape = 's32[1]{0}', space=sflag, size = 0x4, scoped, tag = 'scoped memory for tpu_custom_call.1']
    #allocation8 [shape = 'u8[8192]{0}', space=vmem, size = 0x2000, scoped, tag = 'output window, operand 0, single buffered']
    %8 = vsyncpa [#allocation4], 0
    %9 = vsyncpa [#allocation7], 0
    %10 = vsyncpa [#allocation5], 0
    // Predicated region
    $region2: #{tpu_custom_call.1} parent=1 // pred_check
      _
    $region3: #{tpu_custom_call.1} parent=1 // pred_check_branch
      %12 = sbr.rel (0) target = $region5
    $region4: #{tpu_custom_call.1} parent=1 // pred_region
      %s14 = ssub.s32 256, 256
      %15 = vsyncadd [#allocation4], %s14
      %s16 = sshll.u32 [#allocation3], 4
      %s17 = int_to_ptr.vmem [resolvable:$true] %s16
      %22 = dma.hbm_to_vmem [thread:$0]  %s0, 256, %s17, [#allocation4], 128, 128, 8
    $region5: #{tpu_custom_call.1} parent=1 // pred_fallthru
      _
    // Predicated region
    $region6: #{tpu_custom_call.1} parent=1 // pred_check
      _
    $region7: #{tpu_custom_call.1} parent=1 // pred_check_branch
      %24 = sbr.rel (0) target = $region9
    $region8: #{tpu_custom_call.1} parent=1 // pred_region
      %s26 = ssub.s32 256, 256
      %27 = vsyncadd [#allocation7], %s26
      %s28 = sshll.u32 [#allocation6], 4
      %s29 = int_to_ptr.vmem [resolvable:$true] %s28
      %34 = dma.hbm_to_vmem [thread:$0]  %s1, 256, %s29, [#allocation7], 64, 64, 4
    $region9: #{tpu_custom_call.1} parent=1 // pred_fallthru
      _
    // Predicated region
    $region10: #{tpu_custom_call.1} parent=1 // pred_check
      _
    $region11: #{tpu_custom_call.1} parent=1 // pred_check_branch
      %36 = sbr.rel (0) target = $region13
    $region12: #{tpu_custom_call.1} parent=1 // pred_region
      _
    $region13: #{tpu_custom_call.1} parent=1 // pred_fallthru
      _
    // Predicated region
    $region14: #{tpu_custom_call.1} parent=1 // pred_check
      _
    $region15: #{tpu_custom_call.1} parent=1 // pred_check_branch
      %38 = sbr.rel (0) target = $region17
    $region16: #{tpu_custom_call.1} parent=1 // pred_region
      %39 = dma.done [#allocation4], 256
    $region17: #{tpu_custom_call.1} parent=1 // pred_fallthru
      _
    // Predicated region
    $region18: #{tpu_custom_call.1} parent=1 // pred_check
      _
    $region19: #{tpu_custom_call.1} parent=1 // pred_check_branch
      %41 = sbr.rel (0) target = $region21
    $region20: #{tpu_custom_call.1} parent=1 // pred_region
      %42 = dma.done [#allocation7], 256
    $region21: #{tpu_custom_call.1} parent=1 // pred_fallthru
      _
    %p44 = scmp.eq.s32.totalorder 0, 0
    // Predicated region
    $region22: #{tpu_custom_call.1} parent=1 // pred_check
      %p45 = pneg %p44
    $region23: #{tpu_custom_call.1} parent=1 // pred_check_branch
      %47 = sbr.rel (%p45) target = $region25
    $region24: #{tpu_custom_call.1} parent=1 // pred_region
      %vm48 = vcmask 785408
      %49 = vst.msk [vmem:[#allocation2] sm:$0xff] %vm48, 0.0
      %50 = vst.msk [vmem:[#allocation2 + $0x8] sm:$0xff] %vm48, 0.0
    $region25: #{tpu_custom_call.1} parent=1 // pred_fallthru
      _
    %v51 = vld [vmem:[#allocation2] sm:$0xff]
    %v52 = vld [vmem:[#allocation2 + $0x8] sm:$0xff]
    %v53 = vld [vmem:[#allocation3] sm:$0xff]
    %v54 = vld [vmem:[#allocation3 + $0x8] sm:$0xff]
    %v55 = vpack.c.bf16 %v54, %v53
    %v56 = vld [vmem:[#allocation6] sm:$0xf]
    %v57 = vld [vmem:[#allocation6 + $0x4] sm:$0xf]
    %v58 = vld [vmem:[#allocation6 + $0x8] sm:$0xf]
    %v59 = vld [vmem:[#allocation6 + $0xc] sm:$0xf]
    %v64 = vunpack.c.l.b16 %v56
    %v65 = vunpack.c.l.b16 %v57
    %v66 = vunpack.c.l.b16 %v58
    %v67 = vunpack.c.l.b16 %v59
    %v68 = vpack.c.b16 %v65, %v64
    %v69 = vpack.c.b16 %v67, %v66
    %vm72 = vcmask 261120
    %v74 = vsel %vm72, %v55, 0
    %76 = vmatprep.subr.bf16.mxu0 0
    %77 = vmatpush1.bf16.msra.mxu0 %v68
    %78 = vmatprep.subr.bf16.mxu0 0
    %79 = vmatpush1.bf16.msra.mxu0 %v69
    %80 = vmatprep.subr.bf16.mxu0 0
    %81 = vmatpush1.bf16.msra.mxu0 0
    %82 = vmatprep.subr.bf16.mxu0 0
    %83 = vmatpush1.bf16.msra.mxu0 0
    %84 = vmatprep.subr.bf16.mxu0 0
    %85 = vmatpush1.bf16.msra.mxu0 0
    %86 = vmatprep.subr.bf16.mxu0 0
    %87 = vmatpush1.bf16.msra.mxu0 0
    %88 = vmatprep.subr.bf16.mxu0 0
    %89 = vmatpush1.bf16.msra.mxu0 0
    %90 = vmatprep.subr.bf16.mxu0 0
    %91 = vmatpush1.bf16.msra.mxu0 0
    %92 = vmatprep.subr.bf16.mxu0 0
    %93 = vmatpush1.bf16.msra.mxu0 0
    %94 = vmatprep.subr.bf16.mxu0 0
    %95 = vmatpush1.bf16.msra.mxu0 0
    %96 = vmatprep.subr.bf16.mxu0 0
    %97 = vmatpush1.bf16.msra.mxu0 0
    %98 = vmatprep.subr.bf16.mxu0 0
    %99 = vmatpush1.bf16.msra.mxu0 0
    %100 = vmatprep.subr.bf16.mxu0 0
    %101 = vmatpush1.bf16.msra.mxu0 0
    %102 = vmatprep.subr.bf16.mxu0 0
    %103 = vmatpush1.bf16.msra.mxu0 0
    %104 = vmatprep.subr.bf16.mxu0 0
    %105 = vmatpush1.bf16.msra.mxu0 0
    %106 = vmatprep.subr.bf16.mxu0 0
    %107 = vmatpush1.bf16.msra.mxu0 0
    %108 = vmatprep.mubr.bf16.mxu0 0
    %109 = vmatmul.mubr.bf16.gmra.mrb[0].mxu0 %v74
    %v110 = vpop.f32.mrb[0].mxu0
    %v111 = vadd.f32 0.0, %v110
    %v112 = vpop.f32.mrb[0].mxu0
    %v113 = vpop.f32.mrb[0].mxu0
    %v114 = vadd.f32 0.0, %v113
    %v115 = vpop.f32.mrb[0].mxu0
    %116 = vdwg.mxu0
    %v117 = vadd.f32 %v51, %v111
    %v118 = vadd.f32 %v52, %v114
    %vm119 = vcmask 785408
    %120 = vst.msk [vmem:[#allocation2] sm:$0xff] %vm119, %v117
    %121 = vst.msk [vmem:[#allocation2 + $0x8] sm:$0xff] %vm119, %v118
    // Predicated region
    $region26: #{tpu_custom_call.1} parent=1 // pred_check
      %p122 = pneg %p44
    $region27: #{tpu_custom_call.1} parent=1 // pred_check_branch
      %124 = sbr.rel (%p122) target = $region29
    $region28: #{tpu_custom_call.1} parent=1 // pred_region
      %v125 = vld [vmem:[#allocation2] sm:$0xff]
      %v126 = vld [vmem:[#allocation2 + $0x8] sm:$0xff]
      %v127 = vld [vmem:[%s2] sm:$0x1]
      %v129 = vlaneseq
      %v130 = vshrl.u32 %v129, 7
      %v131 = vsub.s32 0, %v130
      %v132 = vrot.slane %v127, %v131
      %v134 = vadd.f32 %v125, %v132
      %v135 = vadd.f32 %v126, %v132
      %136 = vst.msk [vmem:[#allocation8] sm:$0xff] %vm119, %v134
      %137 = vst.msk [vmem:[#allocation8 + $0x8] sm:$0xff] %vm119, %v135
    $region29: #{tpu_custom_call.1} parent=1 // pred_fallthru
      _
    // Predicated region
    $region30: #{tpu_custom_call.1} parent=1 // pred_check
      _
    $region31: #{tpu_custom_call.1} parent=1 // pred_check_branch
      %139 = sbr.rel (0) target = $region33
    $region32: #{tpu_custom_call.1} parent=1 // pred_region
      %s141 = ssub.s32 256, 256
      %142 = vsyncadd [#allocation5], %s141
      %s143 = sshll.u32 [#allocation8], 4
      %s144 = int_to_ptr.vmem [resolvable:$true] %s143
      %149 = dma.vmem_to_hbm [thread:$0]  %s144, 256, %s3, [#allocation5], 128, 128, 8
    $region33: #{tpu_custom_call.1} parent=1 // pred_fallthru
      _
    // Predicated region
    $region34: #{tpu_custom_call.1} parent=1 // pred_check
      _
    $region35: #{tpu_custom_call.1} parent=1 // pred_check_branch
      %151 = sbr.rel (0) target = $region37
    $region36: #{tpu_custom_call.1} parent=1 // pred_region
      %152 = dma.done [#allocation5], 256
    $region37: #{tpu_custom_call.1} parent=1 // pred_fallthru
      _
    %153 = vsyncpa [#allocation4], 1
    %154 = vsyncpa [#allocation7], 1
    %155 = vsyncpa [#allocation5], 1

</llo_original>
